<compile_context>
chip_gen: v7x
topology: tpu7x:2x2x1
jax: 0.10.0
libtpu: 0.0.40
codegen_flags: <defaults>
</compile_context>

<pallas_src>
import math
from functools import partial

import jax
import jax.numpy as jnp
from jax.experimental import pallas as pl
from jax.experimental.pallas import tpu as pltpu


def _gelu_tanh(x):
    # tanh-approximation GELU (matches the fused "fast gelu" in the CUDA kernel)
    c = math.sqrt(2.0 / math.pi)
    return 0.5 * x * (1.0 + jnp.tanh(c * (x + 0.044715 * x * x * x)))


# --------------------------------------------------------------------------------------------
# Kernel body
# --------------------------------------------------------------------------------------------
def _q8_linear_kernel(*refs, quantize_input: bool, fuse_gelu: bool, use_int8_mxu: bool):
    # ref layouts (in, out, scratch):
    #   quantize_input=True :  x(bm,K) | wT(K,bn) i8 | ws(1,bn) | b(1,bn) | out(bm,bn)
    #                          | xq_scratch(bm,K) | xs_scratch(bm,1)
    #   quantize_input=False, int8 MXU : x(bm,K) i8 | xs(bm,1) | wT | ws | b | out
    #   quantize_input=False, bf16 MXU : x(bm,K) i8 | xs(bm,1) | wT | ws | b | out | xq_scratch
    if quantize_input:
        x_ref, wt_ref, s_ref, b_ref, o_ref, xq_sc, xs_sc = refs
    elif use_int8_mxu:
        x_ref, xs_ref, wt_ref, s_ref, b_ref, o_ref = refs
    else:
        x_ref, xs_ref, wt_ref, s_ref, b_ref, o_ref, xq_sc = refs

    j = pl.program_id(1)  # inner (output-column) axis; x tile is resident across it

    if quantize_input:
        @pl.when(j == 0)
        def _quantize_once():
            x = x_ref[...]                                            # native dtype (bf16/f32)
            amax = jnp.max(jnp.abs(x), axis=-1, keepdims=True).astype(jnp.float32)
            x_scale = amax * (1.0 / 127.0)                            # (bm, 1); zero row -> 0 out
            inv = pl.reciprocal(jnp.where(x_scale > 0.0, x_scale, 1.0), approx=False)
            xq = jnp.clip(jnp.round(x.astype(jnp.float32) * inv), -127.0, 127.0)
            xq_sc[...] = xq.astype(xq_sc.dtype)                       # int8 or bf16 cache
            xs_sc[...] = x_scale

        x_q = xq_sc[...]
        x_scale = xs_sc[...]
    else:
        x_scale = xs_ref[...].astype(jnp.float32)                     # (bm, 1)
        if use_int8_mxu:
            x_q = x_ref[...]                                          # int8, resident tile
        else:
            @pl.when(j == 0)
            def _cast_once():                                         # int8 -> bf16 once per m block
                xq_sc[...] = x_ref[...].astype(xq_sc.dtype)
            x_q = xq_sc[...]

    w = wt_ref[...]                                                   # (K, bn) int8
    if use_int8_mxu:
        # Native int8 MXU (v5e / v6e): int8 x int8 -> int32 accumulate, then dequantize.
        acc = jnp.dot(x_q, w, preferred_element_type=jnp.int32).astype(jnp.float32)
    else:
        # bf16 operands are exact for int8-range values; f32 MXU accumulation (v7x path).
        acc = jnp.dot(x_q, w.astype(jnp.bfloat16), preferred_element_type=jnp.float32)

    out = acc * x_scale * s_ref[...].astype(jnp.float32) + b_ref[...].astype(jnp.float32)
    if fuse_gelu:
        out = _gelu_tanh(out)
    o_ref[...] = out.astype(o_ref.dtype)


# --------------------------------------------------------------------------------------------
# Device-aware sizing
# --------------------------------------------------------------------------------------------
def _device_kind():
    try:
        return jax.devices()[0].device_kind.lower()
    except Exception:
        return ""


def _default_use_int8_mxu():
    # v5e/v5p/v6e MXUs have a native int8 mode; v7x is bf16/fp8 only.
    kind = _device_kind()
    return ("v5" in kind) or ("v6" in kind)


def _vmem_limit_bytes():
    kind = _device_kind()
    cap = None
    try:
        cap = int(pltpu.get_tpu_info().vmem_capacity_bytes)
    except Exception:
        cap = None
    if cap is None:
        cap = 64 * 1024 * 1024 if ("v7" in kind or not kind) else 128 * 1024 * 1024
    if "v7" in kind:
        cap = min(cap, 64 * 1024 * 1024)          # per-TensorCore budget on v7x
    # leave headroom for compiler-managed temporaries
    return max(32 * 1024 * 1024, min(int(cap * 0.7), 100 * 1024 * 1024))


# --------------------------------------------------------------------------------------------
# pallas_call wrapper on prepared 2D operands
# --------------------------------------------------------------------------------------------
def _q8_matmul(x2, wt, s2, b2, xs2, *, quantize_input, fuse_gelu, use_int8_mxu,
               block_m=256, block_n=512):
    M, K = x2.shape
    Kw, N = wt.shape
    assert Kw == K

    x_bytes = jnp.dtype(x2.dtype).itemsize
    sub = 32 if x2.dtype == jnp.int8 else 8
    q_bytes = 1 if use_int8_mxu else 2

    vmem_limit = _vmem_limit_bytes()
    tile_budget = int(vmem_limit * 0.75)

    # lane-dense N tiles when N is large; a single full-dim block when N is small
    bn = N if N <= block_n else max(128, (block_n // 128) * 128)
    # big M tiles (resident activation); single full-dim block when M is small
    bm = M if M <= block_m else max(sub, (block_m // sub) * sub)

    def working_set(bm_, bn_):
        s = 2 * bm_ * K * x_bytes          # x tile (double-buffered)
        s += 2 * K * bn_                   # int8 weight tile (double-buffered)
        s += 2 * bm_ * bn_ * 2             # bf16 output tile (double-buffered)
        s += 4 * bn_ * 4                   # weight scales + bias
        s += bm_ * bn_ * 4                 # f32 acc / out temporaries
        if quantize_input:
            s += bm_ * K * (q_bytes + 4) + bm_ * 8   # xq+xs scratch + f32 quant temporaries
        elif not use_int8_mxu:
            s += bm_ * K * 2               # bf16 x cache
        if not use_int8_mxu:
            s += K * bn_ * 2               # bf16 weight cast temporary
        return s

    while working_set(bm, bn) > tile_budget:
        if bn > 128:
            bn = max(128, ((bn // 2) // 128) * 128)
        elif bm > sub:
            bm = max(sub, ((bm // 2) // sub) * sub)
        else:
            break

    grid = (pl.cdiv(M, bm), pl.cdiv(N, bn))   # m outer (parallel), n inner (x resident)

    in_specs = [pl.BlockSpec((bm, K), lambda i, j: (i, 0))]            # x rows, full K, resident
    args = [x2]
    if not quantize_input:
        in_specs.append(pl.BlockSpec((bm, 1), lambda i, j: (i, 0)))    # given x scales
        args.append(xs2)
    in_specs += [
        pl.BlockSpec((K, bn), lambda i, j: (0, j)),                    # int8 weight (K, N)
        pl.BlockSpec((1, bn), lambda i, j: (0, j)),                    # weight scales
        pl.BlockSpec((1, bn), lambda i, j: (0, j)),                    # bias
    ]
    args += [wt, s2, b2]

    scratch = []
    if quantize_input:
        qdt = jnp.int8 if use_int8_mxu else jnp.bfloat16
        scratch = [pltpu.VMEM((bm, K), qdt), pltpu.VMEM((bm, 1), jnp.float32)]
        dims = ("parallel", "arbitrary")        # inner axis carries the quantization cache
    elif not use_int8_mxu:
        scratch = [pltpu.VMEM((bm, K), jnp.bfloat16)]
        dims = ("parallel", "arbitrary")
    else:
        dims = ("parallel", "parallel")         # no cross-step state -> both axes parallel

    kernel = partial(_q8_linear_kernel, quantize_input=quantize_input,
                     fuse_gelu=fuse_gelu, use_int8_mxu=use_int8_mxu)

    call = pl.pallas_call(
        kernel,
        out_shape=jax.ShapeDtypeStruct((M, N), jnp.bfloat16),
        grid_spec=pltpu.PrefetchScalarGridSpec(
            num_scalar_prefetch=0,
            grid=grid,
            in_specs=in_specs,
            out_specs=pl.BlockSpec((bm, bn), lambda i, j: (i, j)),
            scratch_shapes=scratch,
        ),
        compiler_params=pltpu.CompilerParams(
            dimension_semantics=dims,
            vmem_limit_bytes=vmem_limit),
    )
    return call(*args)


def _q8_linear_impl(x, wt, s2, b2, x_scales, fuse_gelu, use_int8_mxu, block_m, block_n):
    K, N = wt.shape
    lead = x.shape[:-1]
    assert x.shape[-1] == K
    M = int(math.prod(lead)) if lead else 1
    x2 = x.reshape(M, K)

    quantize_input = x_scales is None
    xs2 = None
    if not quantize_input:
        x2 = x2.astype(jnp.int8)                                   # CUDA kernel expects int8 here
        xs2 = jnp.asarray(x_scales, jnp.float32).reshape(M, 1)

    kwargs = dict(quantize_input=quantize_input, fuse_gelu=fuse_gelu,
                  block_m=block_m, block_n=block_n)
    try:
        out = _q8_matmul(x2, wt, s2, b2, xs2, use_int8_mxu=use_int8_mxu, **kwargs)
    except Exception:
        # Safety net if this build rejects the native int8 MXU lowering. NOTE: only effective
        # when not wrapped in an outer jit; under jit pass use_int8_mxu=False explicitly on v7x.
        if not use_int8_mxu:
            raise
        out = _q8_matmul(x2, wt, s2, b2, xs2, use_int8_mxu=False, **kwargs)
    return out.reshape(*lead, N)


# --------------------------------------------------------------------------------------------
# Public APIs
# --------------------------------------------------------------------------------------------
def q8_linear(x, weight_q, bias=None, x_scales=None, w_scales=None, fuse_gelu=False,
              *, block_m=256, block_n=512, use_int8_mxu=None):
    """Functional Pallas equivalent of Q8F.linear.q8_linear (per-call weight transpose)."""
    weight_q = jnp.asarray(weight_q)
    assert weight_q.dtype == jnp.int8
    N, K = weight_q.shape
    if use_int8_mxu is None:
        use_int8_mxu = _default_use_int8_mxu()
    wt = weight_q.T                                                     # prefer Q8Linear to hoist this
    s2 = jnp.asarray(w_scales, jnp.float32).reshape(1, N)
    b2 = (jnp.asarray(bias, jnp.float32) if bias is not None
          else jnp.zeros((N,), jnp.float32)).reshape(1, N)
    return _q8_linear_impl(x, wt, s2, b2, x_scales, fuse_gelu, use_int8_mxu, block_m, block_n)


class Q8Linear:
    """JAX analog of q8_kernels.modules.linear.Q8Linear: frozen int8 weight, f32 scales/bias.

    All frozen-weight preprocessing ((K, N) transpose, f32 rows) is done once at construction.
    """

    def __init__(self, weight_q, w_scales, bias=None, *, block_m=256, block_n=512,
                 use_int8_mxu=None):
        weight_q = jnp.asarray(weight_q, jnp.int8)
        N, K = weight_q.shape
        self.in_features, self.out_features = K, N
        self.block_m, self.block_n = block_m, block_n
        self.use_int8_mxu = _default_use_int8_mxu() if use_int8_mxu is None else use_int8_mxu
        self.wt = jax.block_until_ready(weight_q.T)                     # (K, N), materialized once
        self.w_scales = jnp.asarray(w_scales, jnp.float32).reshape(1, N)
        self.bias = (jnp.asarray(bias, jnp.float32) if bias is not None
                     else jnp.zeros((N,), jnp.float32)).reshape(1, N)

    def __call__(self, x, x_scales=None, fuse_gelu=False):
        return _q8_linear_impl(x, self.wt, self.w_scales, self.bias, x_scales, fuse_gelu,
                               self.use_int8_mxu, self.block_m, self.block_n)


# --------------------------------------------------------------------------------------------
# Reference helpers + self-test
# --------------------------------------------------------------------------------------------
def quantize_rowwise(w):
    """Symmetric per-row int8 quantization (Q8F.quantizer.quantize, no hadamard)."""
    amax = jnp.max(jnp.abs(w), axis=-1, keepdims=True)
    scale = amax / 127.0
    safe = jnp.where(scale > 0.0, scale, 1.0)
    wq = jnp.clip(jnp.round(w / safe), -127, 127).astype(jnp.int8)
    return wq, scale.reshape(-1).astype(jnp.float32)


def reference_dynamic(x, weight_q, bias, w_scales, fuse_gelu=False):
    xf = x.astype(jnp.float32)
    amax = jnp.max(jnp.abs(xf), axis=-1, keepdims=True)
    xs = amax * (1.0 / 127.0)
    inv = 1.0 / jnp.where(xs > 0, xs, 1.0)
    xq = jnp.clip(jnp.round(xf * inv), -127, 127)
    acc = xq @ weight_q.astype(jnp.float32).T
    out = acc * xs * w_scales[None, :] + bias[None, :]
    if fuse_gelu:
        out = _gelu_tanh(out)
    return out.astype(jnp.bfloat16)


if __name__ == "__main__":
    key = jax.random.PRNGKey(0)
    batch, seq, in_features, out_features = 2, 8, 32, 64

    kx, kw, kb = jax.random.split(key, 3)
    x = jax.random.normal(kx, (batch, seq, in_features), dtype=jnp.float32).astype(jnp.bfloat16)
    w_float = jax.random.normal(kw, (out_features, in_features), dtype=jnp.float32) * 0.05
    bias = jax.random.normal(kb, (out_features,), dtype=jnp.float32) * 0.1

    # deterministic "checkpoint": quantize the synthetic weight (from_linear, no hadamard)
    weight_q, w_scales = quantize_rowwise(w_float)
    layer = Q8Linear(weight_q, w_scales, bias)

    # 1) dynamic activation quantization inside the kernel + fused tanh-GELU (module path)
    out = layer(x, fuse_gelu=True)
    out = jax.block_until_ready(out)
    ref = reference_dynamic(x.reshape(-1, in_features), weight_q, bias, w_scales, fuse_gelu=True)
    ref = ref.reshape(batch, seq, out_features)
    assert out.shape == (batch, seq, out_features) and out.dtype == jnp.bfloat16
    err = jnp.max(jnp.abs(out.astype(jnp.float32) - ref.astype(jnp.float32)))
    assert err <= 2e-2, f"dynamic-quant path: max abs err {err}"

    # 2) pre-quantized activations (x already int8, per-row scales given), no GELU (functional)
    xq, xs = quantize_rowwise(x.reshape(-1, in_features).astype(jnp.float32))
    out2 = q8_linear(xq.reshape(batch, seq, in_features), weight_q, bias,
                     x_scales=xs, w_scales=w_scales, fuse_gelu=False)
    out2 = jax.block_until_ready(out2)
    acc2 = xq.astype(jnp.float32) @ weight_q.astype(jnp.float32).T
    ref2 = (acc2 * xs[:, None] * w_scales[None, :] + bias[None, :]).astype(jnp.bfloat16)
    ref2 = ref2.reshape(batch, seq, out_features)
    err2 = jnp.max(jnp.abs(out2.astype(jnp.float32) - ref2.astype(jnp.float32)))
    assert err2 <= 2e-2, f"pre-quantized path: max abs err {err2}"

    print("KERNEL_OK")
</pallas_src>

<mosaic_0001>
module attributes {stable_mosaic.version = 11 : i64} {
  func.func @_q8_linear_kernel(%arg0: i32, %arg1: i32, %arg2: memref<16x32xbf16, #tpu.memory_space<vmem>>, %arg3: memref<32x64xi8, #tpu.memory_space<vmem>>, %arg4: memref<1x64xf32, #tpu.memory_space<vmem>>, %arg5: memref<1x64xf32, #tpu.memory_space<vmem>>, %arg6: memref<16x64xbf16, #tpu.memory_space<vmem>>, %arg7: memref<16x32xbf16, #tpu.memory_space<vmem>>, %arg8: memref<16x1xf32, #tpu.memory_space<vmem>>) attributes {dimension_semantics = [#tpu.dimension_semantics<parallel>, #tpu.dimension_semantics<arbitrary>], iteration_bounds = array<i64: 1, 1>, scalar_prefetch = 0 : i64, scratch_operands = 2 : i64, tpu.core_type = #tpu.core_type<tc>, window_params = [{transform_indices = @transform_0, window_bounds = array<i64: 16, 32>}, {transform_indices = @transform_1, window_bounds = array<i64: 32, 64>}, {transform_indices = @transform_2, window_bounds = array<i64: 1, 64>}, {transform_indices = @transform_3, window_bounds = array<i64: 1, 64>}, {transform_indices = @transform_4, window_bounds = array<i64: 16, 64>}]} {
    %c0_i32 = arith.constant 0 : i32
    %0 = arith.cmpi eq, %arg1, %c0_i32 : i32
    %1 = arith.extui %0 : i1 to i32
    %c0_i32_0 = arith.constant 0 : i32
    %2 = arith.cmpi ne, %1, %c0_i32_0 : i32
    scf.if %2 {
      %c0_16 = arith.constant 0 : index
      %c0_17 = arith.constant 0 : index
      %31 = vector.load %arg2[%c0_16, %c0_17] : memref<16x32xbf16, #tpu.memory_space<vmem>>, vector<16x32xbf16>
      %32 = math.absf %31 : vector<16x32xbf16>
      %cst_18 = arith.constant dense<0xFF80> : vector<16xbf16>
      %33 = vector.multi_reduction <maximumf>, %32, %cst_18 [1] : vector<16x32xbf16> to vector<16xbf16>
      %34 = vector.shape_cast %33 : vector<16xbf16> to vector<16x1xbf16>
      %35 = arith.extf %34 : vector<16x1xbf16> to vector<16x1xf32>
      %cst_19 = arith.constant 0.00787401571 : f32
      %36 = vector.broadcast %cst_19 : f32 to vector<16x1xf32>
      %37 = arith.mulf %35, %36 : vector<16x1xf32>
      %cst_20 = arith.constant 0.000000e+00 : f32
      %38 = vector.broadcast %cst_20 : f32 to vector<16x1xf32>
      %39 = arith.cmpf ogt, %37, %38 : vector<16x1xf32>
      %cst_21 = arith.constant 1.000000e+00 : f32
      %40 = vector.broadcast %cst_21 : f32 to vector<16x1xf32>
      %41 = arith.select %39, %37, %40 : vector<16x1xi1>, vector<16x1xf32>
      %42 = tpu.reciprocal %41 : vector<16x1xf32> -> vector<16x1xf32>
      %43 = arith.extf %31 : vector<16x32xbf16> to vector<16x32xf32>
      %44 = vector.broadcast %42 : vector<16x1xf32> to vector<16x32xf32>
      %45 = arith.mulf %43, %44 : vector<16x32xf32>
      %46 = math.roundeven %45 : vector<16x32xf32>
      %cst_22 = arith.constant -1.270000e+02 : f32
      %cst_23 = arith.constant 1.270000e+02 : f32
      %47 = vector.broadcast %cst_22 : f32 to vector<16x32xf32>
      %48 = arith.maximumf %47, %46 : vector<16x32xf32>
      %49 = vector.broadcast %cst_23 : f32 to vector<16x32xf32>
      %50 = arith.minimumf %49, %48 : vector<16x32xf32>
      %51 = arith.truncf %50 : vector<16x32xf32> to vector<16x32xbf16>
      %c0_24 = arith.constant 0 : index
      %c0_25 = arith.constant 0 : index
      %52 = vector.load %arg7[%c0_24, %c0_25] : memref<16x32xbf16, #tpu.memory_space<vmem>>, vector<16x32xbf16>
      tpu.vector_store %arg7[%c0_24, %c0_25], %51 {strides = array<i32>} : memref<16x32xbf16, #tpu.memory_space<vmem>>, vector<16x32xbf16>,
      %c0_26 = arith.constant 0 : index
      %c0_27 = arith.constant 0 : index
      %53 = vector.load %arg8[%c0_26, %c0_27] : memref<16x1xf32, #tpu.memory_space<vmem>>, vector<16x1xf32>
      tpu.vector_store %arg8[%c0_26, %c0_27], %37 {strides = array<i32>} : memref<16x1xf32, #tpu.memory_space<vmem>>, vector<16x1xf32>,
    } else {
    }
    %c0 = arith.constant 0 : index
    %c0_1 = arith.constant 0 : index
    %3 = vector.load %arg7[%c0, %c0_1] : memref<16x32xbf16, #tpu.memory_space<vmem>>, vector<16x32xbf16>
    %c0_2 = arith.constant 0 : index
    %c0_3 = arith.constant 0 : index
    %4 = vector.load %arg8[%c0_2, %c0_3] : memref<16x1xf32, #tpu.memory_space<vmem>>, vector<16x1xf32>
    %c0_4 = arith.constant 0 : index
    %c0_5 = arith.constant 0 : index
    %5 = vector.load %arg3[%c0_4, %c0_5] : memref<32x64xi8, #tpu.memory_space<vmem>>, vector<32x64xi8>
    %6 = arith.sitofp %5 : vector<32x64xi8> to vector<32x64xbf16>
    %cst = arith.constant dense<0.000000e+00> : vector<16x64xf32>
    %7 = tpu.matmul %3, %6, %cst {dimension_numbers = #tpu.dot_dimension_numbers<[1], [0], [0], [1], [0, 0, 1, 1], [], []>} : vector<16x32xbf16>, vector<32x64xbf16>, vector<16x64xf32> -> vector<16x64xf32>
    %8 = vector.broadcast %4 : vector<16x1xf32> to vector<16x64xf32>
    %9 = arith.mulf %7, %8 : vector<16x64xf32>
    %c0_6 = arith.constant 0 : index
    %c0_7 = arith.constant 0 : index
    %10 = vector.load %arg4[%c0_6, %c0_7] : memref<1x64xf32, #tpu.memory_space<vmem>>, vector<1x64xf32>
    %11 = vector.broadcast %10 : vector<1x64xf32> to vector<16x64xf32>
    %12 = arith.mulf %9, %11 : vector<16x64xf32>
    %c0_8 = arith.constant 0 : index
    %c0_9 = arith.constant 0 : index
    %13 = vector.load %arg5[%c0_8, %c0_9] : memref<1x64xf32, #tpu.memory_space<vmem>>, vector<1x64xf32>
    %14 = vector.broadcast %13 : vector<1x64xf32> to vector<16x64xf32>
    %15 = arith.addf %12, %14 : vector<16x64xf32>
    %cst_10 = arith.constant 5.000000e-01 : f32
    %16 = vector.broadcast %cst_10 : f32 to vector<16x64xf32>
    %17 = arith.mulf %16, %15 : vector<16x64xf32>
    %cst_11 = arith.constant 4.471500e-02 : f32
    %18 = vector.broadcast %cst_11 : f32 to vector<16x64xf32>
    %19 = arith.mulf %18, %15 : vector<16x64xf32>
    %20 = arith.mulf %19, %15 : vector<16x64xf32>
    %21 = arith.mulf %20, %15 : vector<16x64xf32>
    %22 = arith.addf %15, %21 : vector<16x64xf32>
    %cst_12 = arith.constant 0.797884583 : f32
    %23 = vector.broadcast %cst_12 : f32 to vector<16x64xf32>
    %24 = arith.mulf %23, %22 : vector<16x64xf32>
    %25 = math.tanh %24 : vector<16x64xf32>
    %cst_13 = arith.constant 1.000000e+00 : f32
    %26 = vector.broadcast %cst_13 : f32 to vector<16x64xf32>
    %27 = arith.addf %26, %25 : vector<16x64xf32>
    %28 = arith.mulf %17, %27 : vector<16x64xf32>
    %29 = arith.truncf %28 : vector<16x64xf32> to vector<16x64xbf16>
    %c0_14 = arith.constant 0 : index
    %c0_15 = arith.constant 0 : index
    %30 = vector.load %arg6[%c0_14, %c0_15] : memref<16x64xbf16, #tpu.memory_space<vmem>>, vector<16x64xbf16>
    tpu.vector_store %arg6[%c0_14, %c0_15], %29 {strides = array<i32>} : memref<16x64xbf16, #tpu.memory_space<vmem>>, vector<16x64xbf16>,
    return
  }
  func.func @transform_0(%arg0: i32, %arg1: i32) -> (i32, i32) {
    %c0_i32 = arith.constant 0 : i32
    %c0_i32_0 = arith.constant 0 : i32
    return %arg0, %c0_i32 : i32, i32
  }
  func.func @transform_1(%arg0: i32, %arg1: i32) -> (i32, i32) {
    %c0_i32 = arith.constant 0 : i32
    %c0_i32_0 = arith.constant 0 : i32
    return %c0_i32, %arg1 : i32, i32
  }
  func.func @transform_2(%arg0: i32, %arg1: i32) -> (i32, i32) {
    %c0_i32 = arith.constant 0 : i32
    %c0_i32_0 = arith.constant 0 : i32
    return %c0_i32, %arg1 : i32, i32
  }
  func.func @transform_3(%arg0: i32, %arg1: i32) -> (i32, i32) {
    %c0_i32 = arith.constant 0 : i32
    %c0_i32_0 = arith.constant 0 : i32
    return %c0_i32, %arg1 : i32, i32
  }
  func.func @transform_4(%arg0: i32, %arg1: i32) -> (i32, i32) {
    %c0_i32 = arith.constant 0 : i32
    return %arg0, %arg1 : i32, i32
  }
}

</mosaic_0001>

<llo_original>
// kernel: tpu_custom_call.1
$region0: #{tpu_custom_call.1}
  #allocation0 [shape = 'u32[]', space=smem, size = 0x4, offset = 0x4, fixed_abs, tag = 'smem constant byte address 0x4 - core index']
  #allocation1 [shape = 'u32[144,128]{1,0:T(1,128)}', space=vmem, size = 0x12000, scoped, tag = 'internal scratch']
  #allocation2 [shape = 'bf16[16,32]{1,0:T(16,128)(2,1)}', space=vmem, size = 0x1000, scoped, tag = 'scratch operand']
  #allocation3 [shape = 'f32[16,1]{1,0:T(8,128)}', space=vmem, size = 0x2000, scoped, tag = 'scratch operand']
  %s0 = inlined_call_operand.hbm [shape: bf16[16,32], index: 0, kind: input, shape index: {}]
  %s1 = inlined_call_operand.hbm [shape: s8[32,64], index: 1, kind: input, shape index: {}]
  %s2 = inlined_call_operand.hbm [shape: f32[1,64], index: 2, kind: input, shape index: {}]
  %s3 = inlined_call_operand.hbm [shape: f32[1,64], index: 3, kind: input, shape index: {}]
  %s4 = inlined_call_operand.hbm [shape: bf16[16,64], index: 4, kind: output, shape index: {}]
  %s5 = sld [smem:[#allocation0]]
  $region46: #{tpu_custom_call.1} parent=0
    _
  %s7 = ssub.s32 1, %s5
  %s8 = scalar_select 0, %s7, %s5
  $region1: #{tpu_custom_call.1} parent=0
    #allocation4 [shape = 'u8[4096]{0}', space=vmem, size = 0x1000, scoped, tag = 'input window, operand 0, single buffered']
    #allocation5 [shape = 's32[1]{0}', space=sflag, size = 0x4, scoped, tag = 'scoped memory for tpu_custom_call.1']
    #allocation6 [shape = 's32[1]{0}', space=sflag, size = 0x4, scoped, tag = 'scoped memory for tpu_custom_call.1']
    #allocation7 [shape = 'u8[4096]{0}', space=vmem, size = 0x1000, scoped, tag = 'input window, operand 1, single buffered']
    #allocation8 [shape = 's32[1]{0}', space=sflag, size = 0x4, scoped, tag = 'scoped memory for tpu_custom_call.1']
    #allocation9 [shape = 'u8[512]{0}', space=vmem, size = 0x400, scoped, tag = 'input window, operand 2, single buffered']
    #allocation10 [shape = 'u8[512]{0}', space=vmem, size = 0x400, scoped, tag = 'input window, operand 3, single buffered']
    #allocation11 [shape = 's32[1]{0}', space=sflag, size = 0x4, scoped, tag = 'scoped memory for tpu_custom_call.1']
    #allocation12 [shape = 'u8[4096]{0}', space=vmem, size = 0x1000, scoped, tag = 'output window, operand 0, single buffered']
    %9 = vsyncpa [#allocation5], 0
    %10 = vsyncpa [#allocation8], 0
    %11 = vsyncpa [#allocation11], 0
    %12 = vsyncpa [#allocation6], 0
    // Predicated region
    $region2: #{tpu_custom_call.1} parent=1 // pred_check
      _
    $region3: #{tpu_custom_call.1} parent=1 // pred_check_branch
      %14 = sbr.rel (0) target = $region5
    $region4: #{tpu_custom_call.1} parent=1 // pred_region
      %s16 = ssub.s32 128, 128
      %17 = vsyncadd [#allocation5], %s16
      %s18 = sshll.u32 [#allocation4], 4
      %s19 = int_to_ptr.vmem [resolvable:$true] %s18
      %24 = dma.hbm_to_vmem [thread:$0]  %s0, 128, %s19, [#allocation5], 64, 64, 4
    $region5: #{tpu_custom_call.1} parent=1 // pred_fallthru
      _
    // Predicated region
    $region6: #{tpu_custom_call.1} parent=1 // pred_check
      _
    $region7: #{tpu_custom_call.1} parent=1 // pred_check_branch
      %26 = sbr.rel (0) target = $region9
    $region8: #{tpu_custom_call.1} parent=1 // pred_region
      %s28 = ssub.s32 128, 128
      %29 = vsyncadd [#allocation8], %s28
      %s31 = sshll.u32 [#allocation7], 4
      %s32 = int_to_ptr.vmem [resolvable:$true] %s31
      %34 = dma.hbm_to_vmem [thread:$0]  %s1, 128, %s32, [#allocation8]
    $region9: #{tpu_custom_call.1} parent=1 // pred_fallthru
      _
    // Predicated region
    $region10: #{tpu_custom_call.1} parent=1 // pred_check
      _
    $region11: #{tpu_custom_call.1} parent=1 // pred_check_branch
      %36 = sbr.rel (0) target = $region13
    $region12: #{tpu_custom_call.1} parent=1 // pred_region
      %s38 = ssub.s32 16, 16
      %39 = vsyncadd [#allocation8], %s38
      %s41 = sshll.u32 [#allocation9], 4
      %s42 = int_to_ptr.vmem [resolvable:$true] %s41
      %44 = dma.hbm_to_vmem [thread:$0]  %s2, 16, %s42, [#allocation8]
    $region13: #{tpu_custom_call.1} parent=1 // pred_fallthru
      _
    // Predicated region
    $region14: #{tpu_custom_call.1} parent=1 // pred_check
      _
    $region15: #{tpu_custom_call.1} parent=1 // pred_check_branch
      %46 = sbr.rel (0) target = $region17
    $region16: #{tpu_custom_call.1} parent=1 // pred_region
      %s48 = ssub.s32 16, 16
      %49 = vsyncadd [#allocation11], %s48
      %s51 = sshll.u32 [#allocation10], 4
      %s52 = int_to_ptr.vmem [resolvable:$true] %s51
      %54 = dma.hbm_to_vmem [thread:$0]  %s3, 16, %s52, [#allocation11]
    $region17: #{tpu_custom_call.1} parent=1 // pred_fallthru
      _
    // Predicated region
    $region18: #{tpu_custom_call.1} parent=1 // pred_check
      _
    $region19: #{tpu_custom_call.1} parent=1 // pred_check_branch
      %56 = sbr.rel (0) target = $region21
    $region20: #{tpu_custom_call.1} parent=1 // pred_region
      %57 = dma.done [#allocation5], 128
    $region21: #{tpu_custom_call.1} parent=1 // pred_fallthru
      _
    // Predicated region
    $region22: #{tpu_custom_call.1} parent=1 // pred_check
      _
    $region23: #{tpu_custom_call.1} parent=1 // pred_check_branch
      %59 = sbr.rel (0) target = $region25
    $region24: #{tpu_custom_call.1} parent=1 // pred_region
      %60 = dma.done [#allocation8], 128
    $region25: #{tpu_custom_call.1} parent=1 // pred_fallthru
      _
    // Predicated region
    $region26: #{tpu_custom_call.1} parent=1 // pred_check
      _
    $region27: #{tpu_custom_call.1} parent=1 // pred_check_branch
      %62 = sbr.rel (0) target = $region29
    $region28: #{tpu_custom_call.1} parent=1 // pred_region
      %63 = dma.done [#allocation8], 16
    $region29: #{tpu_custom_call.1} parent=1 // pred_fallthru
      _
    // Predicated region
    $region30: #{tpu_custom_call.1} parent=1 // pred_check
      _
    $region31: #{tpu_custom_call.1} parent=1 // pred_check_branch
      %65 = sbr.rel (0) target = $region33
    $region32: #{tpu_custom_call.1} parent=1 // pred_region
      %66 = dma.done [#allocation11], 16
    $region33: #{tpu_custom_call.1} parent=1 // pred_fallthru
      _
    %p69 = scmp.eq.s32.totalorder 0, 0
    // Predicated region
    $region34: #{tpu_custom_call.1} parent=1 // pred_check
      %p70 = pneg %p69
    $region35: #{tpu_custom_call.1} parent=1 // pred_check_branch
      %72 = sbr.rel (%p70) target = $region37
    $region36: #{tpu_custom_call.1} parent=1 // pred_region
      %v73 = vld [vmem:[#allocation4] sm:$0xf]
      %v74 = vld [vmem:[#allocation4 + $0x4] sm:$0xf]
      %v75 = vand.u32 2147450879, %v73
      %v76 = vand.u32 2147450879, %v74
      %v79 = vunpack.c.l.b16 %v75
      %v80 = vunpack.c.l.b16 %v76
      %v81 = vpack.c.b16 %v80, %v79
      %vm82 = vcmask 261120
      %v85 = vsel %vm82, %v81, 4286644096
      %87 = vmax.xlane.bf16.xlu0 %v85
      %v88 = vpop.xlane.xlu0 %87
      %v89 = vunpack.c.l.bf16 %v88
      %v90 = vunpack.c.h.bf16 %v88
      %v91 = vmul.f32 %v89, 0.007874016
      %v92 = vmul.f32 %v90, 0.007874016
      %vm93 = vcmp.gt.f32.partialorder %v91, 0.0
      %vm94 = vcmp.gt.f32.partialorder %v92, 0.0
      %v95 = vsel %vm93, %v91, 1.0
      %v96 = vsel %vm94, %v92, 1.0
      %v97 = vrcp.pop %v95
      %v98 = vrcp.pop %v96
      %v99 = vunpack.c.l.bf16 %v73
      %v100 = vunpack.c.l.bf16 %v74
      %v101 = vmul.f32 %v99, %v97
      %v102 = vmul.f32 %v100, %v98
      %v103 = vround.ne.pseudo %v101
      %v104 = vround.ne.pseudo %v102
      %v105 = vmax.f32 %v103, -127.0
      %v106 = vmax.f32 %v104, -127.0
      %v107 = vmin.f32 %v105, 127.0
      %v108 = vmin.f32 %v106, 127.0
      %v109 = vpack.c.bf16 %v108, %v107
      %110 = vst.msk [vmem:[#allocation2] sm:$0xff] %vm82, %v109
      %vm111 = vcmask 7168
      %112 = vst.msk [vmem:[#allocation3] sm:$0xff] %vm111, %v91
      %113 = vst.msk [vmem:[#allocation3 + $0x8] sm:$0xff] %vm111, %v92
    $region37: #{tpu_custom_call.1} parent=1 // pred_fallthru
      _
    %v114 = vld [vmem:[#allocation2] sm:$0xff]
    %v115 = vld [vmem:[#allocation3] sm:$0xff]
    %v116 = vld [vmem:[#allocation3 + $0x8] sm:$0xff]
    %v117 = vld [vmem:[#allocation7] sm:$0xff]
    %v118 = vunpack.c.l.s8.bf16 %v117
    %v119 = vunpack.c.h.s8.bf16 %v117
    %vm120 = vcmask 261120
    %v122 = vsel %vm120, %v114, 0
    %124 = vmatprep.subr.bf16.mxu0 0
    %125 = vmatpush1.bf16.msra.mxu0 %v118
    %126 = vmatprep.subr.bf16.mxu0 0
    %127 = vmatpush1.bf16.msra.mxu0 %v119
    %128 = vmatprep.subr.bf16.mxu0 0
    %129 = vmatpush1.bf16.msra.mxu0 0
    %130 = vmatprep.subr.bf16.mxu0 0
    %131 = vmatpush1.bf16.msra.mxu0 0
    %132 = vmatprep.subr.bf16.mxu0 0
    %133 = vmatpush1.bf16.msra.mxu0 0
    %134 = vmatprep.subr.bf16.mxu0 0
    %135 = vmatpush1.bf16.msra.mxu0 0
    %136 = vmatprep.subr.bf16.mxu0 0
    %137 = vmatpush1.bf16.msra.mxu0 0
    %138 = vmatprep.subr.bf16.mxu0 0
    %139 = vmatpush1.bf16.msra.mxu0 0
    %140 = vmatprep.subr.bf16.mxu0 0
    %141 = vmatpush1.bf16.msra.mxu0 0
    %142 = vmatprep.subr.bf16.mxu0 0
    %143 = vmatpush1.bf16.msra.mxu0 0
    %144 = vmatprep.subr.bf16.mxu0 0
    %145 = vmatpush1.bf16.msra.mxu0 0
    %146 = vmatprep.subr.bf16.mxu0 0
    %147 = vmatpush1.bf16.msra.mxu0 0
    %148 = vmatprep.subr.bf16.mxu0 0
    %149 = vmatpush1.bf16.msra.mxu0 0
    %150 = vmatprep.subr.bf16.mxu0 0
    %151 = vmatpush1.bf16.msra.mxu0 0
    %152 = vmatprep.subr.bf16.mxu0 0
    %153 = vmatpush1.bf16.msra.mxu0 0
    %154 = vmatprep.subr.bf16.mxu0 0
    %155 = vmatpush1.bf16.msra.mxu0 0
    %156 = vmatprep.mubr.bf16.mxu0 0
    %157 = vmatmul.mubr.bf16.gmra.mrb[0].mxu0 %v122
    %v158 = vpop.f32.mrb[0].mxu0
    %v159 = vadd.f32 0.0, %v158
    %v160 = vpop.f32.mrb[0].mxu0
    %v161 = vpop.f32.mrb[0].mxu0
    %v162 = vadd.f32 0.0, %v161
    %v163 = vpop.f32.mrb[0].mxu0
    %164 = vdwg.mxu0
    %166 = vset.pattern.permute.xlu0 0
    %167 = vperm.xlu0 %166, %v115
    %v168 = vpop.permute.xlu0 %167
    %171 = vset.pattern.permute.xlu0 0
    %172 = vperm.xlu0 %171, %v116
    %v173 = vpop.permute.xlu0 %172
    %v175 = vmul.f32 %v159, %v168
    %v176 = vmul.f32 %v162, %v173
    %v177 = vld [vmem:[#allocation9] sm:$0x1]
    %v179 = vlaneseq
    %v180 = vshrl.u32 %v179, 7
    %v181 = vsub.s32 0, %v180
    %v182 = vrot.slane %v177, %v181
    %v184 = vmul.f32 %v175, %v182
    %v185 = vmul.f32 %v176, %v182
    %v186 = vld [vmem:[#allocation10] sm:$0x1]
    %v188 = vlaneseq
    %v189 = vshrl.u32 %v188, 7
    %v190 = vsub.s32 0, %v189
    %v191 = vrot.slane %v186, %v190
    %v193 = vadd.f32 %v184, %v191
    %v194 = vadd.f32 %v185, %v191
    %v195 = vmul.f32 %v193, 0.5
    %v196 = vmul.f32 %v194, 0.5
    %v197 = vmul.f32 %v193, 0.044715
    %v198 = vmul.f32 %v194, 0.044715
    %v199 = vmul.f32 %v197, %v193
    %v200 = vmul.f32 %v198, %v194
    %v201 = vmul.f32 %v199, %v193
    %v202 = vmul.f32 %v200, %v194
    %v203 = vadd.f32 %v193, %v201
    %v204 = vadd.f32 %v194, %v202
    %v205 = vmul.f32 %v203, 0.7978846
    %v206 = vmul.f32 %v204, 0.7978846
    %v207 = vtanh.pop %v205
    %v208 = vtanh.pop %v206
    %v209 = vadd.f32 %v207, 1.0
    %v210 = vadd.f32 %v208, 1.0
    %v211 = vmul.f32 %v195, %v209
    %v212 = vmul.f32 %v196, %v210
    %v213 = vpack.c.bf16 %v212, %v211
    %v215 = vunpack.c.l.b16 %v213
    %v216 = vunpack.c.h.b16 %v213
    %v217 = vpack.c.b16 %v215, %v215
    %v218 = vpack.c.b16 %v216, %v216
    %vm221 = vcmask 519168
    %222 = vst.msk [vmem:[#allocation12] sm:$0xf] %vm221, %v217
    %223 = vst.msk [vmem:[#allocation12 + $0x4] sm:$0xf] %vm221, %v218
    // Predicated region
    $region38: #{tpu_custom_call.1} parent=1 // pred_check
      _
    $region39: #{tpu_custom_call.1} parent=1 // pred_check_branch
      %225 = sbr.rel (0) target = $region41
    $region40: #{tpu_custom_call.1} parent=1 // pred_region
      %s227 = ssub.s32 128, 128
      %228 = vsyncadd [#allocation6], %s227
      %s229 = sshll.u32 [#allocation12], 4
      %s230 = int_to_ptr.vmem [resolvable:$true] %s229
      %235 = dma.vmem_to_hbm [thread:$0]  %s230, 128, %s4, [#allocation6], 64, 64, 4
    $region41: #{tpu_custom_call.1} parent=1 // pred_fallthru
      _
    // Predicated region
    $region42: #{tpu_custom_call.1} parent=1 // pred_check
      _
    $region43: #{tpu_custom_call.1} parent=1 // pred_check_branch
      %237 = sbr.rel (0) target = $region45
    $region44: #{tpu_custom_call.1} parent=1 // pred_region
      %238 = dma.done [#allocation6], 128
    $region45: #{tpu_custom_call.1} parent=1 // pred_fallthru
      _
    %239 = vsyncpa [#allocation5], 1
    %240 = vsyncpa [#allocation8], 1
    %241 = vsyncpa [#allocation11], 1
    %242 = vsyncpa [#allocation6], 1

</llo_original>
